<compile_context>
chip_gen: v5e
topology: v5e:2x2
jax: 0.10.0
libtpu: 0.0.40
codegen_flags: <defaults>
</compile_context>

<pallas_src>
import math
import functools

import jax
import jax.numpy as jnp
from jax.experimental import pallas as pl
from jax.experimental.pallas import tpu as pltpu


def _mha_kernel(enc_ref, mask_ref, wqkv_ref, wo_ref, gamma_ref, beta_ref,
                out_ref, *attn_refs, eps, compute_dtype):
    Bt, S, H = enc_ref.shape

    e = enc_ref[...]                           # (Bt, S, H) f32 (residual / LN path)
    e2 = e.reshape(Bt * S, H)                  # flatten batch for the projections

    # Fused QKV projection: one MXU pass with N = 3H (weights pre-transposed,
    # stored in compute_dtype, Q columns pre-scaled by 1/sqrt(H)).
    qkv = jnp.dot(e2.astype(compute_dtype), wqkv_ref[...],
                  preferred_element_type=jnp.float32)          # (Bt*S, 3H) f32
    q = qkv[:, 0:H].reshape(Bt, S, H)
    k = qkv[:, H:2 * H].reshape(Bt, S, H)
    v = qkv[:, 2 * H:3 * H].reshape(Bt, S, H)

    # Scaled dot-product attention, batched over the Bt sequences in this tile.
    scores = jnp.einsum('bqh,bkh->bqk',
                        q.astype(compute_dtype), k.astype(compute_dtype),
                        preferred_element_type=jnp.float32)    # (Bt, S, S) f32

    # masked_fill(mask == 0, -1e9); mask is either (S, S) shared or (Bt, S, S).
    m = mask_ref[...]
    scores = jnp.where(m == 0, jnp.float32(-1000000000.0), scores)

    # Numerically-stable softmax in f32 (matches F.softmax).
    scores = scores - jnp.max(scores, axis=-1, keepdims=True)
    p = jnp.exp(scores)
    attn = p * pl.reciprocal(jnp.sum(p, axis=-1, keepdims=True), approx=True)

    # attn @ V, output projection (pre-transposed W_O), residual, LayerNorm.
    ctx = jnp.einsum('bqk,bkh->bqh',
                     attn.astype(compute_dtype), v.astype(compute_dtype),
                     preferred_element_type=jnp.float32)       # (Bt, S, H) f32
    proj = jnp.dot(ctx.reshape(Bt * S, H).astype(compute_dtype), wo_ref[...],
                   preferred_element_type=jnp.float32)         # (Bt*S, H) f32

    x = proj + e2                                              # residual add (f32)
    mean = jnp.mean(x, axis=-1, keepdims=True)
    var = jnp.mean((x - mean) ** 2, axis=-1, keepdims=True)    # biased, like torch LN
    xn = (x - mean) * jax.lax.rsqrt(var + eps)
    y = xn * gamma_ref[...] + beta_ref[...]

    out_ref[...] = y.reshape(Bt, S, H)
    if attn_refs:                                              # optional attn output
        attn_refs[0][...] = attn


def _pick_block_batch(B, S, target_rows=512):
    """Largest divisor Bt of B with Bt*S <= target_rows; prefer >= 2 grid steps."""
    divisors = [d for d in range(1, B + 1) if B % d == 0]
    cands = [d for d in divisors if d * S <= target_rows and (B // d) >= 2]
    if not cands:
        cands = [d for d in divisors if d * S <= target_rows]
    if not cands:
        cands = [1]
    return max(cands)


def multi_head_attention(enc, mask, params, *, num_heads=1, dropout_rate=0.0,
                         return_attn=True, compute_dtype=jnp.bfloat16,
                         block_batch=None):
    """enc: (B, S, H) f32.  mask: (S,S), (B,S,S) or (B,1,S,S) with 0/1 entries.

    Returns (out, attn_dist) with attn_dist shaped (B, num_heads, S, S), or
    (out, None) when return_attn=False (saves the B*S*S HBM writeback).
    """
    assert num_heads == 1, "module is only shape-consistent for num_heads == 1"
    del dropout_rate  # identity in eval/serving mode
    B, S, H = enc.shape
    enc = enc.astype(jnp.float32)

    # Normalize mask shape; share a single (S, S) tile when batch-invariant.
    if mask.ndim == 4:               # PyTorch-style (B, 1, S, S)
        mask = mask[:, 0]
    if mask.ndim == 3 and mask.shape[0] == 1:
        mask = mask[0]
    shared_mask = (mask.ndim == 2)
    mask = mask.astype(jnp.float32)

    # Pack weights once outside the kernel: pre-transposed to (in, out), fused
    # QKV, 1/sqrt(H) folded into the Q columns, cast to the MXU compute dtype.
    scale = 1.0 / math.sqrt(H)
    wqkv = jnp.concatenate(
        [params["W_Q"].T * scale, params["W_K"].T, params["W_V"].T], axis=1
    ).astype(compute_dtype)                                    # (H, 3H)
    wo_t = params["W_O"].T.astype(compute_dtype)               # (H, H)
    gamma = params["ln_gamma"].reshape(1, H).astype(jnp.float32)
    beta = params["ln_beta"].reshape(1, H).astype(jnp.float32)

    Bt = block_batch if block_batch is not None else _pick_block_batch(B, S)
    assert B % Bt == 0
    grid = (B // Bt,)

    kernel = functools.partial(_mha_kernel, eps=1e-6, compute_dtype=compute_dtype)

    in_specs = [
        pl.BlockSpec((Bt, S, H), lambda b: (b, 0, 0)),          # enc
        (pl.BlockSpec((S, S), lambda b: (0, 0)) if shared_mask
         else pl.BlockSpec((Bt, S, S), lambda b: (b, 0, 0))),   # mask
        pl.BlockSpec((H, 3 * H), lambda b: (0, 0)),             # fused W_QKV^T
        pl.BlockSpec((H, H), lambda b: (0, 0)),                 # W_O^T
        # (1, H) blocks equal the full (1, H) arrays -> exempt from (8, 128).
        pl.BlockSpec((1, H), lambda b: (0, 0)),                 # LN gamma
        pl.BlockSpec((1, H), lambda b: (0, 0)),                 # LN beta
    ]
    out_shapes = [jax.ShapeDtypeStruct((B, S, H), jnp.float32)]
    out_specs = [pl.BlockSpec((Bt, S, H), lambda b: (b, 0, 0))]
    if return_attn:
        out_shapes.append(jax.ShapeDtypeStruct((B, S, S), jnp.float32))
        out_specs.append(pl.BlockSpec((Bt, S, S), lambda b: (b, 0, 0)))

    # Explicit VMEM budget sized against the per-step footprint (important for
    # v7x's 64 MiB physical VMEM; cap well below it, floor at the v6e default).
    f32b = 4
    cdb = jnp.dtype(compute_dtype).itemsize
    io_bytes = 2 * (2 * Bt * S * H * f32b)                       # enc + out, 2 buffers
    io_bytes += 2 * (1 if shared_mask else Bt) * S * S * f32b    # mask
    if return_attn:
        io_bytes += 2 * Bt * S * S * f32b                        # attn writeback
    io_bytes += 2 * (H * 3 * H + H * H) * cdb + 4 * H * f32b     # weights + LN params
    scratch = Bt * S * (4 * H + 3 * S) * f32b                    # rough intermediates
    vmem_limit = int(min(48 * 1024 * 1024,
                         max(32 * 1024 * 1024, 2 * (io_bytes + scratch))))

    results = pl.pallas_call(
        kernel,
        out_shape=tuple(out_shapes),
        grid_spec=pltpu.PrefetchScalarGridSpec(
            num_scalar_prefetch=0,
            grid=grid,
            in_specs=in_specs,
            out_specs=tuple(out_specs),
        ),
        compiler_params=pltpu.CompilerParams(
            dimension_semantics=("parallel",),
            vmem_limit_bytes=vmem_limit,
        ),
    )(enc, mask, wqkv, wo_t, gamma, beta)

    out = results[0]
    if return_attn:
        return out, results[1].reshape(B, num_heads, S, S)
    return out, None


def init_params(key, hidden_units):
    kq, kk, kv, ko = jax.random.split(key, 4)
    bound = 1.0 / math.sqrt(hidden_units)   # ~ PyTorch default Linear init range
    def uni(k):
        return jax.random.uniform(k, (hidden_units, hidden_units),
                                  minval=-bound, maxval=bound, dtype=jnp.float32)
    return {
        "W_Q": uni(kq),
        "W_K": uni(kk),
        "W_V": uni(kv),
        "W_O": uni(ko),
        "ln_gamma": jnp.ones((hidden_units,), jnp.float32),
        "ln_beta": jnp.zeros((hidden_units,), jnp.float32),
    }


def _reference(enc, mask2d, params, eps=1e-6):
    """Pure-JAX f32 reference of the PyTorch forward (num_heads == 1)."""
    H = enc.shape[-1]
    q = enc @ params["W_Q"].T
    k = enc @ params["W_K"].T
    v = enc @ params["W_V"].T
    s = (q @ jnp.swapaxes(k, -1, -2)) / math.sqrt(H)
    s = jnp.where(mask2d == 0, -1000000000.0, s)
    a = jax.nn.softmax(s, axis=-1)
    ctx = a @ v
    x = ctx @ params["W_O"].T + enc
    mean = x.mean(-1, keepdims=True)
    var = ((x - mean) ** 2).mean(-1, keepdims=True)
    y = (x - mean) / jnp.sqrt(var + eps) * params["ln_gamma"] + params["ln_beta"]
    return y, a


if __name__ == "__main__":
    B, S, H = 2, 8, 32
    num_heads = 1            # see module-consistency note at the top
    key = jax.random.PRNGKey(0)
    k_enc, k_par = jax.random.split(key)

    enc = jax.random.normal(k_enc, (B, S, H), dtype=jnp.float32)
    causal = jnp.tril(jnp.ones((S, S), jnp.float32))   # batch-invariant 0/1 mask
    params = init_params(k_par, H)

    # Path 1: shared (S, S) mask tile (no per-batch mask HBM traffic).
    out, attn_dist = multi_head_attention(enc, causal, params,
                                          num_heads=num_heads, dropout_rate=0.1)
    out = jax.block_until_ready(out)
    attn_dist = jax.block_until_ready(attn_dist)

    # Path 2: PyTorch-style (B, 1, S, S) mask (per-batch mask tiles).
    mask4 = jnp.broadcast_to(causal, (B, 1, S, S))
    out_b, _ = multi_head_attention(enc, mask4, params,
                                    num_heads=num_heads, dropout_rate=0.1)
    out_b = jax.block_until_ready(out_b)

    ref_out, ref_attn = _reference(enc, causal, params)

    assert out.shape == (B, S, H)
    assert attn_dist.shape == (B, num_heads, S, S)
    assert bool(jnp.all(jnp.isfinite(out)))
    # attention rows sum to 1 (softmax in f32; approx reciprocal -> loose tol)
    assert bool(jnp.all(jnp.abs(jnp.sum(attn_dist, axis=-1) - 1.0) < 5e-3))
    # both mask paths agree
    assert bool(jnp.max(jnp.abs(out - out_b)) < 1e-3)
    # matches the f32 reference within bf16-matmul tolerance
    assert bool(jnp.max(jnp.abs(out - ref_out)) < 1e-1)
    assert bool(jnp.max(jnp.abs(attn_dist[:, 0] - ref_attn)) < 5e-2)
    print("KERNEL_OK")
</pallas_src>

<mosaic_0001>
module attributes {stable_mosaic.version = 11 : i64} {
  func.func @_mha_kernel(%arg0: i32, %arg1: memref<1x8x32xf32, #tpu.memory_space<vmem>>, %arg2: memref<8x8xf32, #tpu.memory_space<vmem>>, %arg3: memref<32x96xbf16, #tpu.memory_space<vmem>>, %arg4: memref<32x32xbf16, #tpu.memory_space<vmem>>, %arg5: memref<1x32xf32, #tpu.memory_space<vmem>>, %arg6: memref<1x32xf32, #tpu.memory_space<vmem>>, %arg7: memref<1x8x32xf32, #tpu.memory_space<vmem>>, %arg8: memref<1x8x8xf32, #tpu.memory_space<vmem>>) attributes {dimension_semantics = [#tpu.dimension_semantics<parallel>], iteration_bounds = array<i64: 2>, scalar_prefetch = 0 : i64, scratch_operands = 0 : i64, tpu.core_type = #tpu.core_type<tc>, window_params = [{transform_indices = @transform_0, window_bounds = array<i64: 1, 8, 32>}, {pipeline_mode = #tpu.pipeline_mode<synchronous>, transform_indices = @transform_1, window_bounds = array<i64: 8, 8>}, {pipeline_mode = #tpu.pipeline_mode<synchronous>, transform_indices = @transform_2, window_bounds = array<i64: 32, 96>}, {pipeline_mode = #tpu.pipeline_mode<synchronous>, transform_indices = @transform_3, window_bounds = array<i64: 32, 32>}, {pipeline_mode = #tpu.pipeline_mode<synchronous>, transform_indices = @transform_4, window_bounds = array<i64: 1, 32>}, {pipeline_mode = #tpu.pipeline_mode<synchronous>, transform_indices = @transform_5, window_bounds = array<i64: 1, 32>}, {transform_indices = @transform_6, window_bounds = array<i64: 1, 8, 32>}, {transform_indices = @transform_7, window_bounds = array<i64: 1, 8, 8>}]} {
    %c0 = arith.constant 0 : index
    %c0_0 = arith.constant 0 : index
    %c0_1 = arith.constant 0 : index
    %0 = vector.load %arg1[%c0, %c0_0, %c0_1] : memref<1x8x32xf32, #tpu.memory_space<vmem>>, vector<1x8x32xf32>
    %1 = vector.shape_cast %0 : vector<1x8x32xf32> to vector<8x32xf32>
    %2 = arith.truncf %1 : vector<8x32xf32> to vector<8x32xbf16>
    %c0_2 = arith.constant 0 : index
    %c0_3 = arith.constant 0 : index
    %3 = vector.load %arg3[%c0_2, %c0_3] : memref<32x96xbf16, #tpu.memory_space<vmem>>, vector<32x96xbf16>
    %cst = arith.constant dense<0.000000e+00> : vector<8x96xf32>
    %4 = tpu.matmul %2, %3, %cst {dimension_numbers = #tpu.dot_dimension_numbers<[1], [0], [0], [1], [0, 0, 1, 1], [], []>} : vector<8x32xbf16>, vector<32x96xbf16>, vector<8x96xf32> -> vector<8x96xf32>
    %5 = vector.extract_strided_slice %4 {offsets = [0, 0], sizes = [8, 32], strides = [1, 1]} : vector<8x96xf32> to vector<8x32xf32>
    %6 = vector.shape_cast %5 : vector<8x32xf32> to vector<1x8x32xf32>
    %7 = vector.extract_strided_slice %4 {offsets = [0, 32], sizes = [8, 32], strides = [1, 1]} : vector<8x96xf32> to vector<8x32xf32>
    %8 = vector.shape_cast %7 : vector<8x32xf32> to vector<1x8x32xf32>
    %9 = vector.extract_strided_slice %4 {offsets = [0, 64], sizes = [8, 32], strides = [1, 1]} : vector<8x96xf32> to vector<8x32xf32>
    %10 = vector.shape_cast %9 : vector<8x32xf32> to vector<1x8x32xf32>
    %11 = arith.truncf %6 : vector<1x8x32xf32> to vector<1x8x32xbf16>
    %12 = arith.truncf %8 : vector<1x8x32xf32> to vector<1x8x32xbf16>
    "tpu.trace_start"() <{level = 10 : i32, message = "bqh,bkh->bqk"}> : () -> ()
    %cst_4 = arith.constant dense<0.000000e+00> : vector<1x8x8xf32>
    %13 = tpu.matmul %11, %12, %cst_4 {dimension_numbers = #tpu.dot_dimension_numbers<[2], [2], [1], [1], [0, 0, 0, 1, 1, 1], [0], [0]>} : vector<1x8x32xbf16>, vector<1x8x32xbf16>, vector<1x8x8xf32> -> vector<1x8x8xf32>
    "tpu.trace_stop"() : () -> ()
    %c0_5 = arith.constant 0 : index
    %c0_6 = arith.constant 0 : index
    %14 = vector.load %arg2[%c0_5, %c0_6] : memref<8x8xf32, #tpu.memory_space<vmem>>, vector<8x8xf32>
    %cst_7 = arith.constant 0.000000e+00 : f32
    %15 = vector.broadcast %cst_7 : f32 to vector<8x8xf32>
    %16 = arith.cmpf oeq, %14, %15 : vector<8x8xf32>
    %cst_8 = arith.constant -1.000000e+09 : f32
    %17 = vector.shape_cast %16 : vector<8x8xi1> to vector<1x8x8xi1>
    %18 = vector.broadcast %cst_8 : f32 to vector<1x8x8xf32>
    %19 = arith.select %17, %18, %13 : vector<1x8x8xi1>, vector<1x8x8xf32>
    %cst_9 = arith.constant dense<0xFF800000> : vector<1x8xf32>
    %20 = vector.multi_reduction <maximumf>, %19, %cst_9 [2] : vector<1x8x8xf32> to vector<1x8xf32>
    %21 = vector.shape_cast %20 : vector<1x8xf32> to vector<1x8x1xf32>
    %22 = vector.broadcast %21 : vector<1x8x1xf32> to vector<1x8x8xf32>
    %23 = arith.subf %19, %22 : vector<1x8x8xf32>
    %24 = math.exp %23 : vector<1x8x8xf32>
    %cst_10 = arith.constant dense<0.000000e+00> : vector<1x8xf32>
    %25 = vector.multi_reduction <add>, %24, %cst_10 [2] : vector<1x8x8xf32> to vector<1x8xf32>
    %26 = vector.shape_cast %25 : vector<1x8xf32> to vector<1x8x1xf32>
    %27 = tpu.reciprocal %26 {approx = true} : vector<1x8x1xf32> -> vector<1x8x1xf32>
    %28 = vector.broadcast %27 : vector<1x8x1xf32> to vector<1x8x8xf32>
    %29 = arith.mulf %24, %28 : vector<1x8x8xf32>
    %30 = arith.truncf %29 : vector<1x8x8xf32> to vector<1x8x8xbf16>
    %31 = arith.truncf %10 : vector<1x8x32xf32> to vector<1x8x32xbf16>
    "tpu.trace_start"() <{level = 10 : i32, message = "bqk,bkh->bqh"}> : () -> ()
    %cst_11 = arith.constant dense<0.000000e+00> : vector<1x8x32xf32>
    %32 = tpu.matmul %30, %31, %cst_11 {dimension_numbers = #tpu.dot_dimension_numbers<[2], [1], [1], [2], [0, 0, 0, 1, 1, 2], [0], [0]>} : vector<1x8x8xbf16>, vector<1x8x32xbf16>, vector<1x8x32xf32> -> vector<1x8x32xf32>
    "tpu.trace_stop"() : () -> ()
    %33 = vector.shape_cast %32 : vector<1x8x32xf32> to vector<8x32xf32>
    %34 = arith.truncf %33 : vector<8x32xf32> to vector<8x32xbf16>
    %c0_12 = arith.constant 0 : index
    %c0_13 = arith.constant 0 : index
    %35 = vector.load %arg4[%c0_12, %c0_13] : memref<32x32xbf16, #tpu.memory_space<vmem>>, vector<32x32xbf16>
    %cst_14 = arith.constant dense<0.000000e+00> : vector<8x32xf32>
    %36 = tpu.matmul %34, %35, %cst_14 {dimension_numbers = #tpu.dot_dimension_numbers<[1], [0], [0], [1], [0, 0, 1, 1], [], []>} : vector<8x32xbf16>, vector<32x32xbf16>, vector<8x32xf32> -> vector<8x32xf32>
    %37 = arith.addf %36, %1 : vector<8x32xf32>
    %cst_15 = arith.constant dense<0.000000e+00> : vector<8xf32>
    %38 = vector.multi_reduction <add>, %37, %cst_15 [1] : vector<8x32xf32> to vector<8xf32>
    %39 = vector.shape_cast %38 : vector<8xf32> to vector<8x1xf32>
    %cst_16 = arith.constant 3.200000e+01 : f32
    %40 = vector.broadcast %cst_16 : f32 to vector<8x1xf32>
    %41 = arith.divf %39, %40 : vector<8x1xf32>
    %42 = vector.broadcast %41 : vector<8x1xf32> to vector<8x32xf32>
    %43 = arith.subf %37, %42 : vector<8x32xf32>
    %44 = arith.mulf %43, %43 : vector<8x32xf32>
    %cst_17 = arith.constant dense<0.000000e+00> : vector<8xf32>
    %45 = vector.multi_reduction <add>, %44, %cst_17 [1] : vector<8x32xf32> to vector<8xf32>
    %46 = vector.shape_cast %45 : vector<8xf32> to vector<8x1xf32>
    %cst_18 = arith.constant 3.200000e+01 : f32
    %47 = vector.broadcast %cst_18 : f32 to vector<8x1xf32>
    %48 = arith.divf %46, %47 : vector<8x1xf32>
    %49 = vector.broadcast %41 : vector<8x1xf32> to vector<8x32xf32>
    %50 = arith.subf %37, %49 : vector<8x32xf32>
    %cst_19 = arith.constant 9.99999997E-7 : f32
    %51 = vector.broadcast %cst_19 : f32 to vector<8x1xf32>
    %52 = arith.addf %48, %51 : vector<8x1xf32>
    %53 = math.rsqrt %52 : vector<8x1xf32>
    %54 = vector.broadcast %53 : vector<8x1xf32> to vector<8x32xf32>
    %55 = arith.mulf %50, %54 : vector<8x32xf32>
    %c0_20 = arith.constant 0 : index
    %c0_21 = arith.constant 0 : index
    %56 = vector.load %arg5[%c0_20, %c0_21] : memref<1x32xf32, #tpu.memory_space<vmem>>, vector<1x32xf32>
    %57 = vector.broadcast %56 : vector<1x32xf32> to vector<8x32xf32>
    %58 = arith.mulf %55, %57 : vector<8x32xf32>
    %c0_22 = arith.constant 0 : index
    %c0_23 = arith.constant 0 : index
    %59 = vector.load %arg6[%c0_22, %c0_23] : memref<1x32xf32, #tpu.memory_space<vmem>>, vector<1x32xf32>
    %60 = vector.broadcast %59 : vector<1x32xf32> to vector<8x32xf32>
    %61 = arith.addf %58, %60 : vector<8x32xf32>
    %62 = vector.shape_cast %61 : vector<8x32xf32> to vector<1x8x32xf32>
    %c0_24 = arith.constant 0 : index
    %c0_25 = arith.constant 0 : index
    %c0_26 = arith.constant 0 : index
    %63 = vector.load %arg7[%c0_24, %c0_25, %c0_26] : memref<1x8x32xf32, #tpu.memory_space<vmem>>, vector<1x8x32xf32>
    tpu.vector_store %arg7[%c0_24, %c0_25, %c0_26], %62 {strides = array<i32>} : memref<1x8x32xf32, #tpu.memory_space<vmem>>, vector<1x8x32xf32>,
    %c0_27 = arith.constant 0 : index
    %c0_28 = arith.constant 0 : index
    %c0_29 = arith.constant 0 : index
    %64 = vector.load %arg8[%c0_27, %c0_28, %c0_29] : memref<1x8x8xf32, #tpu.memory_space<vmem>>, vector<1x8x8xf32>
    tpu.vector_store %arg8[%c0_27, %c0_28, %c0_29], %29 {strides = array<i32>} : memref<1x8x8xf32, #tpu.memory_space<vmem>>, vector<1x8x8xf32>,
    return
  }
  func.func @transform_0(%arg0: i32) -> (i32, i32, i32) {
    %c0_i32 = arith.constant 0 : i32
    %c0_i32_0 = arith.constant 0 : i32
    %c0_i32_1 = arith.constant 0 : i32
    return %arg0, %c0_i32, %c0_i32_0 : i32, i32, i32
  }
  func.func @transform_1(%arg0: i32) -> (i32, i32) {
    %c0_i32 = arith.constant 0 : i32
    %c0_i32_0 = arith.constant 0 : i32
    %c0_i32_1 = arith.constant 0 : i32
    return %c0_i32, %c0_i32_0 : i32, i32
  }
  func.func @transform_2(%arg0: i32) -> (i32, i32) {
    %c0_i32 = arith.constant 0 : i32
    %c0_i32_0 = arith.constant 0 : i32
    %c0_i32_1 = arith.constant 0 : i32
    return %c0_i32, %c0_i32_0 : i32, i32
  }
  func.func @transform_3(%arg0: i32) -> (i32, i32) {
    %c0_i32 = arith.constant 0 : i32
    %c0_i32_0 = arith.constant 0 : i32
    %c0_i32_1 = arith.constant 0 : i32
    return %c0_i32, %c0_i32_0 : i32, i32
  }
  func.func @transform_4(%arg0: i32) -> (i32, i32) {
    %c0_i32 = arith.constant 0 : i32
    %c0_i32_0 = arith.constant 0 : i32
    %c0_i32_1 = arith.constant 0 : i32
    return %c0_i32, %c0_i32_0 : i32, i32
  }
  func.func @transform_5(%arg0: i32) -> (i32, i32) {
    %c0_i32 = arith.constant 0 : i32
    %c0_i32_0 = arith.constant 0 : i32
    %c0_i32_1 = arith.constant 0 : i32
    return %c0_i32, %c0_i32_0 : i32, i32
  }
  func.func @transform_6(%arg0: i32) -> (i32, i32, i32) {
    %c0_i32 = arith.constant 0 : i32
    %c0_i32_0 = arith.constant 0 : i32
    %c0_i32_1 = arith.constant 0 : i32
    return %arg0, %c0_i32, %c0_i32_0 : i32, i32, i32
  }
  func.func @transform_7(%arg0: i32) -> (i32, i32, i32) {
    %c0_i32 = arith.constant 0 : i32
    %c0_i32_0 = arith.constant 0 : i32
    %c0_i32_1 = arith.constant 0 : i32
    return %arg0, %c0_i32, %c0_i32_0 : i32, i32, i32
  }
}

</mosaic_0001>

<llo_original>
// kernel: tpu_custom_call.1
$region0: #{tpu_custom_call.1}
  #allocation0 [shape = 'u32[]', space=smem, size = 0x4, offset = 0x4, fixed_abs, tag = 'smem constant byte address 0x4 - core index']
  #allocation1 [shape = 'u32[72,128]{1,0:T(1,128)}', space=vmem, size = 0x9000, scoped, tag = 'internal scratch']
  %s0 = inlined_call_operand.hbm [shape: f32[2,8,32], index: 0, kind: input, shape index: {}]
  %s1 = inlined_call_operand.hbm [shape: f32[8,8], index: 1, kind: input, shape index: {}]
  %s2 = inlined_call_operand.hbm [shape: bf16[32,96], index: 2, kind: input, shape index: {}]
  %s3 = inlined_call_operand.hbm [shape: bf16[32,32], index: 3, kind: input, shape index: {}]
  %s4 = inlined_call_operand.vmem [shape: f32[1,32], index: 4, kind: input, shape index: {}]
  %s5 = inlined_call_operand.vmem [shape: f32[1,32], index: 5, kind: input, shape index: {}]
  %s6 = inlined_call_operand.hbm [shape: f32[2,8,32], index: 6, kind: output, shape index: {0}]
  %s7 = inlined_call_operand.hbm [shape: f32[2,8,8], index: 7, kind: output, shape index: {1}]
  %8 = xla_tuple %s6, %s7
  %s9 = sld [smem:[#allocation0]]
  $region81: #{tpu_custom_call.1} parent=0
    _
  %s11 = ssub.s32 1, %s9
  %s12 = scalar_select 0, %s11, %s9
  $region1: #{tpu_custom_call.1} parent=0
    #allocation2 [shape = 'u8[8192]{0}', space=vmem, size = 0x2000, scoped, tag = 'input window, operand 0']
    #allocation3 [shape = 's32[2]{0}', space=sflag, size = 0x8, scoped, tag = 'scoped memory for tpu_custom_call.1']
    #allocation4 [shape = 's32[2]{0}', space=sflag, size = 0x8, scoped, tag = 'scoped memory for tpu_custom_call.1']
    #allocation5 [shape = 'u8[4096]{0}', space=vmem, size = 0x1000, scoped, tag = 'input window, operand 1, single buffered']
    #allocation6 [shape = 's32[1]{0}', space=sflag, size = 0x4, scoped, tag = 'scoped memory for tpu_custom_call.1']
    #allocation7 [shape = 'u8[8192]{0}', space=vmem, size = 0x2000, scoped, tag = 'input window, operand 2, single buffered']
    #allocation8 [shape = 'u8[8192]{0}', space=vmem, size = 0x2000, scoped, tag = 'input window, operand 3, single buffered']
    #allocation9 [shape = 's32[1]{0}', space=sflag, size = 0x4, scoped, tag = 'scoped memory for tpu_custom_call.1']
    #allocation10 [shape = 'u8[8192]{0}', space=vmem, size = 0x2000, scoped, tag = 'output window, operand 0']
    #allocation11 [shape = 'u8[8192]{0}', space=vmem, size = 0x2000, scoped, tag = 'output window, operand 1']
    #allocation12 [shape = 's32[2]{0}', space=sflag, size = 0x8, scoped, tag = 'scoped memory for tpu_custom_call.1']
    %13 = vsyncpa [#allocation3], 0
    %s14 = scalar_lea.sflag [#allocation3], 1
    %15 = vsyncpa %s14, 0
    %16 = vsyncpa [#allocation6], 0
    %17 = vsyncpa [#allocation9], 0
    %18 = vsyncpa [#allocation4], 0
    %s19 = scalar_lea.sflag [#allocation4], 1
    %20 = vsyncpa %s19, 0
    %21 = vsyncpa [#allocation12], 0
    %s22 = scalar_lea.sflag [#allocation12], 1
    %23 = vsyncpa %s22, 0
    loop: start=0, step=1, limit=4
    $region2: #{tpu_custom_call.1} parent=1 // loop_pre_header
      _
    $region3: #{tpu_custom_call.1} parent=1 // loop_header
      %s25 = sphi 0, %s29
      %p26 = scmp.ge.s32.totalorder %s25, 4
      %s35 = sphi 0, %s37
      %s38 = sphi 0, %s35
      %s39 = sphi 0, %s38
      %s55 = sphi 0, %s39
      %s59 = sphi 0, %s59
      %s61 = sphi 0, %s59
      %s62 = sphi 0, %s61
      %s76 = sphi 0, %s62
      %s80 = sphi 0, %s80
      %s82 = sphi 0, %s80
      %s83 = sphi 0, %s82
      %s97 = sphi 0, %s83
      %s101 = sphi 0, %s101
      %s103 = sphi 0, %s101
      %s104 = sphi 0, %s103
      %s118 = sphi 0, %s104
      %s122 = sphi 0, %s122
      %s124 = sphi 0, %s122
      %s125 = sphi 0, %s124
      %s139 = sphi 0, %s125
      %s143 = sphi 0, %s143
      %s145 = sphi 0, %s143
      %s146 = sphi 0, %s145
      %s160 = sphi 0, %s146
      %s166 = sphi 0, %s168
      %s169 = sphi 0, %s166
      %s170 = sphi 0, %s169
      %s186 = sphi 0, %s170
      %s192 = sphi 0, %s194
      %s195 = sphi 0, %s192
      %s196 = sphi 0, %s195
      %s212 = sphi 0, %s196
    $region4: #{tpu_custom_call.1} parent=1 // loop_header_branch
      %28 = sbr.rel (%p26) target = $region8
    $region5: #{tpu_custom_call.1} parent=1 // loop_body
      %s30 = ssub.s32 %s25, 1
      %s31 = ssub.s32 %s25, 2
      %s32 = sadd.s32 %s25, 1
      %s33 = ssub.s32 %s25, %s32
      %p34 = scmp.eq.s32.totalorder %s33, 0
      %s36 = sadd.s32 %s35, 1
      %s37 = scalar_select %p34, %s35, %s36
      %p40 = pneg %p34
      %p41 = scmp.eq.s32.totalorder %s25, 1
      %p42 = por %p40, %p41
      %p43 = scmp.ne.s32.totalorder %s35, %s38
      %p44 = scmp.eq.s32.totalorder %s25, 0
      %p45 = por %p43, %p44
      %p46 = scmp.ne.s32.totalorder %s35, %s38
      %p47 = scmp.eq.s32.totalorder %s30, 1
      %p48 = por %p46, %p47
      %p49 = scmp.ne.s32.totalorder %s38, %s39
      %p50 = scmp.eq.s32.totalorder %s30, 0
      %p51 = por %p49, %p50
      %p52 = scmp.ne.s32.totalorder %s38, %s39
      %p53 = scmp.eq.s32.totalorder %s31, 1
      %p54 = por %p52, %p53
      %p56 = scmp.ne.s32.totalorder %s39, %s55
      %p57 = scmp.eq.s32.totalorder %s31, 0
      %p58 = por %p56, %p57
      %s60 = sadd.s32 %s59, 1
      %p63 = scmp.eq.s32.totalorder %s25, 1
      %p64 = scmp.ne.s32.totalorder %s59, %s61
      %p65 = scmp.eq.s32.totalorder %s25, 0
      %p66 = por %p64, %p65
      %p67 = scmp.ne.s32.totalorder %s59, %s61
      %p68 = scmp.eq.s32.totalorder %s30, 1
      %p69 = por %p67, %p68
      %p70 = scmp.ne.s32.totalorder %s61, %s62
      %p71 = scmp.eq.s32.totalorder %s30, 0
      %p72 = por %p70, %p71
      %p73 = scmp.ne.s32.totalorder %s61, %s62
      %p74 = scmp.eq.s32.totalorder %s31, 1
      %p75 = por %p73, %p74
      %p77 = scmp.ne.s32.totalorder %s62, %s76
      %p78 = scmp.eq.s32.totalorder %s31, 0
      %p79 = por %p77, %p78
      %s81 = sadd.s32 %s80, 1
      %p84 = scmp.eq.s32.totalorder %s25, 1
      %p85 = scmp.ne.s32.totalorder %s80, %s82
      %p86 = scmp.eq.s32.totalorder %s25, 0
      %p87 = por %p85, %p86
      %p88 = scmp.ne.s32.totalorder %s80, %s82
      %p89 = scmp.eq.s32.totalorder %s30, 1
      %p90 = por %p88, %p89
      %p91 = scmp.ne.s32.totalorder %s82, %s83
      %p92 = scmp.eq.s32.totalorder %s30, 0
      %p93 = por %p91, %p92
      %p94 = scmp.ne.s32.totalorder %s82, %s83
      %p95 = scmp.eq.s32.totalorder %s31, 1
      %p96 = por %p94, %p95
      %p98 = scmp.ne.s32.totalorder %s83, %s97
      %p99 = scmp.eq.s32.totalorder %s31, 0
      %p100 = por %p98, %p99
      %s102 = sadd.s32 %s101, 1
      %p105 = scmp.eq.s32.totalorder %s25, 1
      %p106 = scmp.ne.s32.totalorder %s101, %s103
      %p107 = scmp.eq.s32.totalorder %s25, 0
      %p108 = por %p106, %p107
      %p109 = scmp.ne.s32.totalorder %s101, %s103
      %p110 = scmp.eq.s32.totalorder %s30, 1
      %p111 = por %p109, %p110
      %p112 = scmp.ne.s32.totalorder %s103, %s104
      %p113 = scmp.eq.s32.totalorder %s30, 0
      %p114 = por %p112, %p113
      %p115 = scmp.ne.s32.totalorder %s103, %s104
      %p116 = scmp.eq.s32.totalorder %s31, 1
      %p117 = por %p115, %p116
      %p119 = scmp.ne.s32.totalorder %s104, %s118
      %p120 = scmp.eq.s32.totalorder %s31, 0
      %p121 = por %p119, %p120
      %s123 = sadd.s32 %s122, 1
      %p126 = scmp.eq.s32.totalorder %s25, 1
      %p127 = scmp.ne.s32.totalorder %s122, %s124
      %p128 = scmp.eq.s32.totalorder %s25, 0
      %p129 = por %p127, %p128
      %p130 = scmp.ne.s32.totalorder %s122, %s124
      %p131 = scmp.eq.s32.totalorder %s30, 1
      %p132 = por %p130, %p131
      %p133 = scmp.ne.s32.totalorder %s124, %s125
      %p134 = scmp.eq.s32.totalorder %s30, 0
      %p135 = por %p133, %p134
      %p136 = scmp.ne.s32.totalorder %s124, %s125
      %p137 = scmp.eq.s32.totalorder %s31, 1
      %p138 = por %p136, %p137
      %p140 = scmp.ne.s32.totalorder %s125, %s139
      %p141 = scmp.eq.s32.totalorder %s31, 0
      %p142 = por %p140, %p141
      %s144 = sadd.s32 %s143, 1
      %p147 = scmp.eq.s32.totalorder %s25, 1
      %p148 = scmp.ne.s32.totalorder %s143, %s145
      %p149 = scmp.eq.s32.totalorder %s25, 0
      %p150 = por %p148, %p149
      %p151 = scmp.ne.s32.totalorder %s143, %s145
      %p152 = scmp.eq.s32.totalorder %s30, 1
      %p153 = por %p151, %p152
      %p154 = scmp.ne.s32.totalorder %s145, %s146
      %p155 = scmp.eq.s32.totalorder %s30, 0
      %p156 = por %p154, %p155
      %p157 = scmp.ne.s32.totalorder %s145, %s146
      %p158 = scmp.eq.s32.totalorder %s31, 1
      %p159 = por %p157, %p158
      %p161 = scmp.ne.s32.totalorder %s146, %s160
      %p162 = scmp.eq.s32.totalorder %s31, 0
      %p163 = por %p161, %p162
      %s164 = ssub.s32 %s25, %s32
      %p165 = scmp.eq.s32.totalorder %s164, 0
      %s167 = sadd.s32 %s166, 1
      %s168 = scalar_select %p165, %s166, %s167
      %p171 = pneg %p165
      %p172 = scmp.eq.s32.totalorder %s25, 1
      %p173 = por %p171, %p172
      %p174 = scmp.ne.s32.totalorder %s166, %s169
      %p175 = scmp.eq.s32.totalorder %s25, 0
      %p176 = por %p174, %p175
      %p177 = scmp.ne.s32.totalorder %s166, %s169
      %p178 = scmp.eq.s32.totalorder %s30, 1
      %p179 = por %p177, %p178
      %p180 = scmp.ne.s32.totalorder %s169, %s170
      %p181 = scmp.eq.s32.totalorder %s30, 0
      %p182 = por %p180, %p181
      %p183 = scmp.ne.s32.totalorder %s169, %s170
      %p184 = scmp.eq.s32.totalorder %s31, 1
      %p185 = por %p183, %p184
      %p187 = scmp.ne.s32.totalorder %s170, %s186
      %p188 = scmp.eq.s32.totalorder %s31, 0
      %p189 = por %p187, %p188
      %s190 = ssub.s32 %s25, %s32
      %p191 = scmp.eq.s32.totalorder %s190, 0
      %s193 = sadd.s32 %s192, 1
      %s194 = scalar_select %p191, %s192, %s193
      %p197 = pneg %p191
      %p198 = scmp.eq.s32.totalorder %s25, 1
      %p199 = por %p197, %p198
      %p200 = scmp.ne.s32.totalorder %s192, %s195
      %p201 = scmp.eq.s32.totalorder %s25, 0
      %p202 = por %p200, %p201
      %p203 = scmp.ne.s32.totalorder %s192, %s195
      %p204 = scmp.eq.s32.totalorder %s30, 1
      %p205 = por %p203, %p204
      %p206 = scmp.ne.s32.totalorder %s195, %s196
      %p207 = scmp.eq.s32.totalorder %s30, 0
      %p208 = por %p206, %p207
      %p209 = scmp.ne.s32.totalorder %s195, %s196
      %p210 = scmp.eq.s32.totalorder %s31, 1
      %p211 = por %p209, %p210
      %p213 = scmp.ne.s32.totalorder %s196, %s212
      %p214 = scmp.eq.s32.totalorder %s31, 0
      %p215 = por %p213, %p214
      %p216 = scmp.le.s32.totalorder 1, %s25
      %p217 = scmp.lt.s32.totalorder %s25, 3
      %p218 = pnand %p216, %p217
      %p219 = pneg %p218
      // Predicated region
      $region9: #{tpu_custom_call.1} parent=5 // pred_check
        _
      $region10: #{tpu_custom_call.1} parent=5 // pred_check_branch
        %221 = sbr.rel (%p218) target = $region12
      $region11: #{tpu_custom_call.1} parent=5 // pred_region
        %s222 = ssub.s32 %s25, 1
        // Predicated region
        $region13: #{tpu_custom_call.1} parent=11 // pred_check
          %p223 = pneg %p72
        $region14: #{tpu_custom_call.1} parent=11 // pred_check_branch
          %225 = sbr.rel (%p223) target = $region16
        $region15: #{tpu_custom_call.1} parent=11 // pred_region
          %227 = vsyncadd [#allocation6], 0
          %s229 = sshll.u32 %s1, 4
          %s230 = int_to_ptr.hbm [resolvable:$true] %s229
          %s231 = sshll.u32 [#allocation5], 4
          %s232 = int_to_ptr.vmem [resolvable:$true] %s231
          %234 = dma.hbm_to_vmem [thread:$0]  %s230, 128, %s232, [#allocation6]
        $region16: #{tpu_custom_call.1} parent=11 // pred_fallthru
          _
        // Predicated region
        $region17: #{tpu_custom_call.1} parent=11 // pred_check
          %p235 = pneg %p93
        $region18: #{tpu_custom_call.1} parent=11 // pred_check_branch
          %237 = sbr.rel (%p235) target = $region20
        $region19: #{tpu_custom_call.1} parent=11 // pred_region
          %239 = vsyncadd [#allocation6], 0
          %s240 = sshll.u32 %s2, 4
          %s241 = int_to_ptr.hbm [resolvable:$true] %s240
          %s242 = sshll.u32 [#allocation7], 4
          %s243 = int_to_ptr.vmem [resolvable:$true] %s242
          %248 = dma.hbm_to_vmem [thread:$0]  %s241, 256, %s243, [#allocation6], 64, 64, 4
        $region20: #{tpu_custom_call.1} parent=11 // pred_fallthru
          _
        // Predicated region
        $region21: #{tpu_custom_call.1} parent=11 // pred_check
          %p249 = pneg %p114
        $region22: #{tpu_custom_call.1} parent=11 // pred_check_branch
          %251 = sbr.rel (%p249) target = $region24
        $region23: #{tpu_custom_call.1} parent=11 // pred_region
          %253 = vsyncadd [#allocation9], 0
          %s254 = sshll.u32 %s3, 4
          %s255 = int_to_ptr.hbm [resolvable:$true] %s254
          %s256 = sshll.u32 [#allocation8], 4
          %s257 = int_to_ptr.vmem [resolvable:$true] %s256
          %262 = dma.hbm_to_vmem [thread:$0]  %s255, 256, %s257, [#allocation9], 64, 64, 4
        $region24: #{tpu_custom_call.1} parent=11 // pred_fallthru
          _
        // Predicated region
        $region25: #{tpu_custom_call.1} parent=11 // pred_check
          %p263 = pneg %p135
        $region26: #{tpu_custom_call.1} parent=11 // pred_check_branch
          %265 = sbr.rel (%p263) target = $region28
        $region27: #{tpu_custom_call.1} parent=11 // pred_region
          _
        $region28: #{tpu_custom_call.1} parent=11 // pred_fallthru
          _
        // Predicated region
        $region29: #{tpu_custom_call.1} parent=11 // pred_check
          %p266 = pneg %p156
        $region30: #{tpu_custom_call.1} parent=11 // pred_check_branch
          %268 = sbr.rel (%p266) target = $region32
        $region31: #{tpu_custom_call.1} parent=11 // pred_region
          _
        $region32: #{tpu_custom_call.1} parent=11 // pred_fallthru
          _
      $region12: #{tpu_custom_call.1} parent=5 // pred_fallthru
        _
      %p269 = scmp.lt.s32.totalorder %s25, 2
      // Predicated region
      $region33: #{tpu_custom_call.1} parent=5 // pred_check
        %p270 = pneg %p269
      $region34: #{tpu_custom_call.1} parent=5 // pred_check_branch
        %272 = sbr.rel (%p270) target = $region36
      $region35: #{tpu_custom_call.1} parent=5 // pred_region
        // Predicated region
        $region37: #{tpu_custom_call.1} parent=35 // pred_check
          %p273 = pneg %p45
        $region38: #{tpu_custom_call.1} parent=35 // pred_check_branch
          %275 = sbr.rel (%p273) target = $region40
        $region39: #{tpu_custom_call.1} parent=35 // pred_region
          %s276 = sand.u32 %s35, 1
          %s277 = scalar_lea.sflag [#allocation3], %s276
          %s278 = sand.u32 %s35, 1
          %s279 = smul.addr %s278, 8
          %s280 = scalar_lea.vmem [#allocation2], %s279
          %282 = vsyncadd %s277, 0
          %s283 = smul.addr %s25, 8
          %s284 = scalar_lea.hbm %s0, %s283
          %s286 = sshll.u32 %s284, 4
          %s287 = int_to_ptr.hbm [resolvable:$true] %s286
          %s288 = sshll.u32 %s280, 4
          %s289 = int_to_ptr.vmem [resolvable:$true] %s288
          %291 = dma.hbm_to_vmem [thread:$0]  %s287, 128, %s289, %s277
        $region40: #{tpu_custom_call.1} parent=35 // pred_fallthru
          _
      $region36: #{tpu_custom_call.1} parent=5 // pred_fallthru
        _
      %p292 = scmp.le.s32.totalorder 1, %s25
      %p293 = scmp.lt.s32.totalorder %s25, 3
      %p294 = pnand %p292, %p293
      %p295 = pneg %p294
      // Predicated region
      $region41: #{tpu_custom_call.1} parent=5 // pred_check
        _
      $region42: #{tpu_custom_call.1} parent=5 // pred_check_branch
        %297 = sbr.rel (%p294) target = $region44
      $region43: #{tpu_custom_call.1} parent=5 // pred_region
        %s298 = ssub.s32 %s25, 1
        %s299 = sand.u32 %s38, 1
        %s300 = scalar_lea.sflag [#allocation3], %s299
        %s301 = sand.u32 %s38, 1
        %s302 = smul.addr %s301, 8
        %s303 = scalar_lea.vmem [#allocation2], %s302
        // Predicated region
        $region45: #{tpu_custom_call.1} parent=43 // pred_check
          %p304 = pneg %p51
        $region46: #{tpu_custom_call.1} parent=43 // pred_check_branch
          %306 = sbr.rel (%p304) target = $region48
        $region47: #{tpu_custom_call.1} parent=43 // pred_region
          %308 = dma.done %s300, 128
        $region48: #{tpu_custom_call.1} parent=43 // pred_fallthru
          _
        // Predicated region
        $region49: #{tpu_custom_call.1} parent=43 // pred_check
          %p309 = pneg %p72
        $region50: #{tpu_custom_call.1} parent=43 // pred_check_branch
          %311 = sbr.rel (%p309) target = $region52
        $region51: #{tpu_custom_call.1} parent=43 // pred_region
          %313 = dma.done [#allocation6], 128
        $region52: #{tpu_custom_call.1} parent=43 // pred_fallthru
          _
        // Predicated region
        $region53: #{tpu_custom_call.1} parent=43 // pred_check
          %p314 = pneg %p93
        $region54: #{tpu_custom_call.1} parent=43 // pred_check_branch
          %316 = sbr.rel (%p314) target = $region56
        $region55: #{tpu_custom_call.1} parent=43 // pred_region
          %318 = dma.done [#allocation6], 256
        $region56: #{tpu_custom_call.1} parent=43 // pred_fallthru
          _
        // Predicated region
        $region57: #{tpu_custom_call.1} parent=43 // pred_check
          %p319 = pneg %p114
        $region58: #{tpu_custom_call.1} parent=43 // pred_check_branch
          %321 = sbr.rel (%p319) target = $region60
        $region59: #{tpu_custom_call.1} parent=43 // pred_region
          %323 = dma.done [#allocation9], 256
        $region60: #{tpu_custom_call.1} parent=43 // pred_fallthru
          _
        %s324 = sand.u32 %s38, 1
        %s325 = scalar_lea.sflag [#allocation3], %s324
        %s326 = sand.u32 %s38, 1
        %s327 = smul.addr %s326, 8
        %s328 = scalar_lea.vmem [#allocation2], %s327
        %p329 = pneg %p51
        %p330 = pneg %p48
        %p331 = pneg %p72
        %p332 = pneg %p69
        %p333 = pneg %p93
        %p334 = pneg %p90
        %p335 = pneg %p114
        %p336 = pneg %p111
        %p337 = pneg %p135
        %p338 = pneg %p132
        %p339 = pneg %p156
        %p340 = pneg %p153
        %p341 = pneg %p182
        %p342 = pneg %p179
        %s343 = sand.u32 %s169, 1
        %s344 = scalar_lea.sflag [#allocation4], %s343
        %s345 = sand.u32 %s169, 1
        %s346 = smul.addr %s345, 8
        %s347 = scalar_lea.vmem [#allocation10], %s346
        %p348 = pneg %p208
        %p349 = pneg %p205
        %s350 = sand.u32 %s195, 1
        %s351 = scalar_lea.sflag [#allocation12], %s350
        %s352 = sand.u32 %s195, 1
        %s353 = smul.addr %s352, 8
        %s354 = scalar_lea.vmem [#allocation11], %s353
        %v356 = vld [vmem:[%s303] sm:$0xff]
        %v357 = vpack.c.bf16 %v356, %v356
        %v358 = vld [vmem:[#allocation7] sm:$0xf]
        %v359 = vld [vmem:[#allocation7 + $0x4] sm:$0xf]
        %v360 = vld [vmem:[#allocation7 + $0x8] sm:$0xf]
        %v361 = vld [vmem:[#allocation7 + $0xc] sm:$0xf]
        %v366 = vunpack.c.l.b16 %v358
        %v367 = vunpack.c.l.b16 %v359
        %v368 = vunpack.c.l.b16 %v360
        %v369 = vunpack.c.l.b16 %v361
        %v370 = vpack.c.b16 %v367, %v366
        %v371 = vpack.c.b16 %v369, %v368
        %vm374 = vcmask 261120
        %v376 = vsel %vm374, %v357, 0
        %378 = vmatpush.bf16.msra.mxu0 0
        %379 = vmatpush.bf16.msra.mxu0 0
        %380 = vmatpush.bf16.msra.mxu0 0
        %381 = vmatpush.bf16.msra.mxu0 0
        %382 = vmatpush.bf16.msra.mxu0 0
        %383 = vmatpush.bf16.msra.mxu0 0
        %384 = vmatpush.bf16.msra.mxu0 %v371
        %385 = vmatpush.bf16.msra.mxu0 %v370
        %386 = vmatmul.bf16.gmra.mxu0 %v376
        %v387 = vpop.f32.mrf.mxu0
        %v388 = vadd.f32 0.0, %v387
        %v389 = vpop.f32.mrf.mxu0
        %390 = vdwg.mxu0
        %v391 = vpack.c.bf16 %v388, %v388
        %v393 = vunpack.c.l.b16 %v391
        %v394 = vpack.c.b16 %v393, %v393
        %395 = vrot.lane.b32.xlu0 %v394, 96
        %v396 = vpop.permute.xlu0 %395
        %v398 = vsel %vm374, %v391, 0
        %v401 = vsel %vm374, %v396, 0
        %403 = vmatpush.bf16.xpose.msra.mxu0 0
        %404 = vmatpush.bf16.xpose.msra.mxu0 0
        %405 = vmatpush.bf16.xpose.msra.mxu0 0
        %406 = vmatpush.bf16.xpose.msra.mxu0 0
        %407 = vmatpush.bf16.xpose.msra.mxu0 0
        %408 = vmatpush.bf16.xpose.msra.mxu0 0
        %409 = vmatpush.bf16.xpose.msra.mxu0 0
        %410 = vmatpush.bf16.xpose.msra.mxu0 %v401
        %411 = vmatmul.bf16.gmra.mxu0 %v398
        %v412 = vpop.f32.mrf.mxu0
        %v413 = vadd.f32 0.0, %v412
        %v414 = vpop.f32.mrf.mxu0
        %415 = vdwg.mxu0
        %v416 = vld [vmem:[#allocation5] sm:$0xff]
        %vm417 = vcmp.eq.f32.partialorder %v416, 0.0
        %v418 = vsel %vm417, -1e+09, %v413
        %vm419 = vcmask 64512
        %v420 = vsel %vm419, %v418, -inf
        %421 = vmax.xlane.f32.xlu0 %v420
        %v422 = vpop.xlane.xlu0 %421
        %v423 = vsub.f32 %v418, %v422
        %v424 = vmul.f32 %v423, 1.442695
        %v425 = vpow.pop %v424
        %v426 = vsel %vm419, %v425, 0.0
        %427 = vadd.xlane.f32.xlu0 %v426
        %v428 = vpop.xlane.xlu0 %427
        %v429 = vrcp.pop %v428
        %v430 = vmul.f32 %v425, %v429
        %v431 = vpack.c.bf16 %v430, %v430
        %432 = vrot.lane.b32.xlu0 %v394, 64
        %v433 = vpop.permute.xlu0 %432
        %v435 = vsel %vm419, %v431, 0
        %vm437 = vcmask 1043456
        %v439 = vsel %vm437, %v433, 0
        %441 = vmatpush.bf16.msra.mxu0 0
        %442 = vmatpush.bf16.msra.mxu0 0
        %443 = vmatpush.bf16.msra.mxu0 0
        %444 = vmatpush.bf16.msra.mxu0 0
        %445 = vmatpush.bf16.msra.mxu0 0
        %446 = vmatpush.bf16.msra.mxu0 0
        %447 = vmatpush.bf16.msra.mxu0 0
        %448 = vmatpush.bf16.msra.mxu0 %v439
        %449 = vmatmul.bf16.gmra.mxu0 %v435
        %v450 = vpop.f32.mrf.mxu0
        %v451 = vadd.f32 0.0, %v450
        %v452 = vpop.f32.mrf.mxu0
        %453 = vdwg.mxu0
        %v454 = vpack.c.bf16 %v451, %v451
        %v455 = vld [vmem:[#allocation8] sm:$0xf]
        %v456 = vld [vmem:[#allocation8 + $0x4] sm:$0xf]
        %v457 = vld [vmem:[#allocation8 + $0x8] sm:$0xf]
        %v458 = vld [vmem:[#allocation8 + $0xc] sm:$0xf]
        %v463 = vunpack.c.l.b16 %v455
        %v464 = vunpack.c.l.b16 %v456
        %v465 = vunpack.c.l.b16 %v457
        %v466 = vunpack.c.l.b16 %v458
        %v467 = vpack.c.b16 %v464, %v463
        %v468 = vpack.c.b16 %v466, %v465
        %v472 = vsel %vm374, %v454, 0
        %474 = vmatpush.bf16.msra.mxu0 0
        %475 = vmatpush.bf16.msra.mxu0 0
        %476 = vmatpush.bf16.msra.mxu0 0
        %477 = vmatpush.bf16.msra.mxu0 0
        %478 = vmatpush.bf16.msra.mxu0 0
        %479 = vmatpush.bf16.msra.mxu0 0
        %480 = vmatpush.bf16.msra.mxu0 %v468
        %481 = vmatpush.bf16.msra.mxu0 %v467
        %482 = vmatmul.bf16.gmra.mxu0 %v472
        %v483 = vpop.f32.mrf.mxu0
        %v484 = vadd.f32 %v356, %v483
        %v485 = vpop.f32.mrf.mxu0
        %486 = vdwg.mxu0
        %v487 = vsel %vm374, %v484, 0.0
        %488 = vadd.xlane.f32.xlu0 %v487
        %v489 = vpop.xlane.xlu0 %488
        %v490 = vrcp.pop 32.0
        %v491 = vmul.f32 32.0, %v490
        %v492 = vsub.f32 1.0, %v491
        %v493 = vmul.f32 %v490, %v492
        %v494 = vadd.f32 %v490, %v493
        %vm495 = vweird.f32 %v490
        %v496 = vsel %vm495, %v490, %v494
        %v497 = vmul.f32 %v489, %v496
        %v498 = vsub.f32 %v484, %v497
        %v499 = vmul.f32 %v498, %v498
        %v500 = vsel %vm374, %v499, 0.0
        %501 = vadd.xlane.f32.xlu0 %v500
        %v502 = vpop.xlane.xlu0 %501
        %v503 = vmul.f32 %v502, %v496
        %v504 = vadd.f32 %v503, 1e-06
        %v505 = vrsqrt.pop %v504
        %v506 = vmul.f32 %v505, %v504
        %v507 = vmul.f32 %v506, %v505
        %v508 = vmul.f32 0.5, %v507
        %v509 = vsub.f32 1.5, %v508
        %v510 = vmul.f32 %v505, %v509
        %vm511 = vweird.f32 %v504
        %vm512 = vweird.f32 %v505
        %vm513 = vmor %vm511, %vm512
        %v514 = vsel %vm513, %v505, %v510
        %v515 = vmul.f32 %v498, %v514
        %v516 = vld [vmem:[%s4] sm:$0x1]
        %v518 = vperm.slane %v516, 0
        %v520 = vmul.f32 %v515, %v518
        %v521 = vld [vmem:[%s5] sm:$0x1]
        %v523 = vperm.slane %v521, 0
        %v525 = vadd.f32 %v520, %v523
        %526 = vst.msk [vmem:[%s347] sm:$0xff] %vm374, %v525
        %527 = vst.msk [vmem:[%s354] sm:$0xff] %vm419, %v430
        %s528 = sand.u32 %s169, 1
        %s529 = scalar_lea.sflag [#allocation4], %s528
        %s530 = sand.u32 %s169, 1
        %s531 = smul.addr %s530, 8
        %s532 = scalar_lea.vmem [#allocation10], %s531
        %s533 = sand.u32 %s195, 1
        %s534 = scalar_lea.sflag [#allocation12], %s533
        %s535 = sand.u32 %s195, 1
        %s536 = smul.addr %s535, 8
        %s537 = scalar_lea.vmem [#allocation11], %s536
        // Predicated region
        $region61: #{tpu_custom_call.1} parent=43 // pred_check
          %p538 = pneg %p179
        $region62: #{tpu_custom_call.1} parent=43 // pred_check_branch
          %540 = sbr.rel (%p538) target = $region64
        $region63: #{tpu_custom_call.1} parent=43 // pred_region
          %542 = vsyncadd %s529, 0
          %s543 = smul.addr %s30, 8
          %s544 = scalar_lea.hbm %s6, %s543
          %s546 = sshll.u32 %s532, 4
          %s547 = int_to_ptr.vmem [resolvable:$true] %s546
          %s548 = sshll.u32 %s544, 4
          %s549 = int_to_ptr.hbm [resolvable:$true] %s548
          %551 = dma.vmem_to_hbm [thread:$0]  %s547, 128, %s549, %s529
        $region64: #{tpu_custom_call.1} parent=43 // pred_fallthru
          _
        // Predicated region
        $region65: #{tpu_custom_call.1} parent=43 // pred_check
          %p552 = pneg %p205
        $region66: #{tpu_custom_call.1} parent=43 // pred_check_branch
          %554 = sbr.rel (%p552) target = $region68
        $region67: #{tpu_custom_call.1} parent=43 // pred_region
          %556 = vsyncadd %s534, 0
          %s557 = smul.addr %s30, 8
          %s558 = scalar_lea.hbm %s7, %s557
          %s560 = sshll.u32 %s537, 4
          %s561 = int_to_ptr.vmem [resolvable:$true] %s560
          %s562 = sshll.u32 %s558, 4
          %s563 = int_to_ptr.hbm [resolvable:$true] %s562
          %565 = dma.vmem_to_hbm [thread:$0]  %s561, 128, %s563, %s534
        $region68: #{tpu_custom_call.1} parent=43 // pred_fallthru
          _
      $region44: #{tpu_custom_call.1} parent=5 // pred_fallthru
        _
      %p566 = scmp.le.s32.totalorder 2, %s25
      // Predicated region
      $region69: #{tpu_custom_call.1} parent=5 // pred_check
        %p567 = pneg %p566
      $region70: #{tpu_custom_call.1} parent=5 // pred_check_branch
        %569 = sbr.rel (%p567) target = $region72
      $region71: #{tpu_custom_call.1} parent=5 // pred_region
        %s570 = ssub.s32 %s25, 2
        // Predicated region
        $region73: #{tpu_custom_call.1} parent=71 // pred_check
          %p571 = pneg %p185
        $region74: #{tpu_custom_call.1} parent=71 // pred_check_branch
          %573 = sbr.rel (%p571) target = $region76
        $region75: #{tpu_custom_call.1} parent=71 // pred_region
          %s574 = sand.u32 %s170, 1
          %s575 = scalar_lea.sflag [#allocation4], %s574
          %s576 = sand.u32 %s170, 1
          %s577 = smul.addr %s576, 8
          %s578 = scalar_lea.vmem [#allocation10], %s577
          %580 = dma.done %s575, 128
        $region76: #{tpu_custom_call.1} parent=71 // pred_fallthru
          _
        // Predicated region
        $region77: #{tpu_custom_call.1} parent=71 // pred_check
          %p581 = pneg %p211
        $region78: #{tpu_custom_call.1} parent=71 // pred_check_branch
          %583 = sbr.rel (%p581) target = $region80
        $region79: #{tpu_custom_call.1} parent=71 // pred_region
          %s584 = sand.u32 %s196, 1
          %s585 = scalar_lea.sflag [#allocation12], %s584
          %s586 = sand.u32 %s196, 1
          %s587 = smul.addr %s586, 8
          %s588 = scalar_lea.vmem [#allocation11], %s587
          %590 = dma.done %s585, 128
        $region80: #{tpu_custom_call.1} parent=71 // pred_fallthru
          _
      $region72: #{tpu_custom_call.1} parent=5 // pred_fallthru
        _
    $region6: #{tpu_custom_call.1} parent=1 // loop_footer
      %s29 = sadd.s32 1, %s25
    $region7: #{tpu_custom_call.1} parent=1 // loop_footer_branch
      %24 = sbr.rel target = $region3
    $region8: #{tpu_custom_call.1} parent=1 // loop_exit
      _
    %591 = vsyncpa [#allocation3], 1
    %s592 = scalar_lea.sflag [#allocation3], 1
    %593 = vsyncpa %s592, 1
    %594 = vsyncpa [#allocation6], 1
    %595 = vsyncpa [#allocation9], 1
    %596 = vsyncpa [#allocation4], 1
    %s597 = scalar_lea.sflag [#allocation4], 1
    %598 = vsyncpa %s597, 1
    %599 = vsyncpa [#allocation12], 1
    %s600 = scalar_lea.sflag [#allocation12], 1
    %601 = vsyncpa %s600, 1

</llo_original>
